<compile_context>
chip_gen: v7x
topology: tpu7x:2x2x1
jax: 0.10.0
libtpu: 0.0.40
codegen_flags: <defaults>
</compile_context>

<pallas_src>
import jax
import jax.numpy as jnp
from jax.experimental import pallas as pl
from jax.experimental.pallas import tpu as pltpu


# Which 3x3-kernel row/col indices contribute to each (phase, offset) pair when
# the nearest-2x upsample is folded into the conv (same table for rows & cols).
_S = {(0, 0): (0,), (0, 1): (1, 2), (1, 0): (0, 1), (1, 1): (2,)}


def _phase_weights(w_oihw):
    """Pre-combine the OIHW 3x3 kernel into 9 stacked phase-filter matrices.

    Returns (9, 4*Cout, Cin): entry [3*r + c] multiplies the input window with
    (row, col) offset (r, c) into the 1-padded original-resolution input; its 4
    row-blocks are the 4 output phases p = 2*a + b (zero block if that phase
    does not use this window).
    """
    Cout, Cin = w_oihw.shape[0], w_oihw.shape[1]
    blocks = []
    for r in range(3):
        for c in range(3):
            rows = []
            for a in range(2):
                for bb in range(2):
                    u, v = r - a, c - bb
                    if 0 <= u <= 1 and 0 <= v <= 1:
                        m = sum(w_oihw[:, :, k, l]
                                for k in _S[(a, u)] for l in _S[(bb, v)])
                    else:
                        m = jnp.zeros((Cout, Cin), w_oihw.dtype)
                    rows.append(m)
            blocks.append(jnp.concatenate(rows, axis=0))      # (4*Cout, Cin)
    return jnp.stack(blocks, axis=0).astype(jnp.float32)       # (9, 4*Cout, Cin)


def _row_stride(H, W):
    # Smallest Wp >= W with H*Wp a multiple of 128 -> lane-dense unmasked stores.
    Wp = W
    while (H * Wp) % 128 != 0:
        Wp += 1
    return Wp


@jax.jit
def up_conv_forward(x, w_oihw, b, gamma, beta):
    eps = 1e-5
    N, Cin, H, W = x.shape
    Cout = w_oihw.shape[0]
    Wp = _row_stride(H, W)          # padded row stride (== W here: no junk lanes)
    L = H * Wp                      # flattened spatial length (multiple of 128)
    K = 9 * Cin + 1                 # 9 taps * Cin  +  1 ones-row for the bias
    Kp = -(-K // 8) * 8             # pad K to a sublane multiple (free in the MXU)

    # ---- fused phase-filter weight matrix: (4*Cout, Kp) --------------------
    wstack = _phase_weights(w_oihw)                                    # (9,4C,Cin)
    w_fused = jnp.transpose(wstack, (1, 0, 2)).reshape(4 * Cout, 9 * Cin)
    bias_col = jnp.tile(b.astype(jnp.float32), 4).reshape(4 * Cout, 1)
    w_fused = jnp.concatenate(
        [w_fused, bias_col, jnp.zeros((4 * Cout, Kp - K), jnp.float32)],
        axis=1)                                                        # (4C, Kp)
    # TODO(synk): on v6e/v7x, cast w_fused/x_stk to bf16 for the MXU inputs
    # (keep f32 accumulation + stats); kept f32 here for the 1e-4 tolerance.

    # ---- stacked 9-tap window operand: (N, Kp, L) ---------------------------
    # Built wrapper-side (tiny). Each tap is a shifted copy of the 1-padded
    # original-resolution input; rows padded from W to Wp lanes, then flattened.
    xf = x.astype(jnp.float32)
    xp = jnp.pad(xf, ((0, 0), (0, 0), (1, 1), (1, 1)))                 # (N,Cin,H+2,W+2)
    taps = [xp[:, :, r:r + H, c:c + W] for r in range(3) for c in range(3)]
    x_stk = jnp.stack(taps, axis=1).reshape(N, 9 * Cin, H, W)
    x_stk = jnp.pad(x_stk, ((0, 0), (0, 0), (0, 0), (0, Wp - W)))
    x_stk = x_stk.reshape(N, 9 * Cin, L)
    x_stk = jnp.concatenate(
        [x_stk, jnp.ones((N, 1, L), jnp.float32),                      # bias row
         jnp.zeros((N, Kp - K, L), jnp.float32)], axis=1)              # (N, Kp, L)

    # Lane-validity mask (1 on the W real columns of each Wp-long row); all-ones
    # when Wp == W, kept so the BN stats never see pad lanes in the general case.
    mask = (jnp.arange(L) % Wp < W).astype(jnp.float32).reshape(1, L)

    # ------------------------------------------------------------------
    # Kernel 1: one fused (4*Cout, Kp) @ (Kp, L) matmul per batch element
    # (conv + folded bias) plus per-(phase, channel) BN partial statistics.
    # ------------------------------------------------------------------
    def conv_kernel(x_ref, w_ref, m_ref, y_ref, stat_ref):
        # x_ref: (Kp, L)  w_ref: (4*Cout, Kp)  m_ref: (1, L)
        # y_ref: (4*Cout, L)  stat_ref: (4*Cout, 2)
        acc = jnp.dot(w_ref[...], x_ref[...],
                      preferred_element_type=jnp.float32)              # (4C, L)
        y_ref[...] = acc                                               # unmasked vst
        pv = acc * m_ref[...]                                          # mask pad lanes
        # 2-lane masked store, but only 256 B/step: negligible.
        stat_ref[:, 0:1] = jnp.sum(pv, axis=1, keepdims=True)
        stat_ref[:, 1:2] = jnp.sum(pv * acc, axis=1, keepdims=True)

    yconv, stats = pl.pallas_call(
        conv_kernel,
        out_shape=(jax.ShapeDtypeStruct((N, 4 * Cout, L), jnp.float32),
                   jax.ShapeDtypeStruct((N, 4 * Cout, 2), jnp.float32)),
        grid=(N,),
        in_specs=[
            pl.BlockSpec((None, Kp, L), lambda n: (n, 0, 0)),
            pl.BlockSpec((4 * Cout, Kp), lambda n: (0, 0)),
            pl.BlockSpec((1, L), lambda n: (0, 0)),
        ],
        out_specs=(
            pl.BlockSpec((None, 4 * Cout, L), lambda n: (n, 0, 0)),
            pl.BlockSpec((None, 4 * Cout, 2), lambda n: (n, 0, 0)),
        ),
        # TODO(synk): on v7x use pltpu.CORE_PARALLEL (or pl.core_map) to pin the
        # batch steps onto both TensorCores; on v5e/v6e a single step over the
        # batch-concatenated lane axis would halve the fixed per-step overhead.
        compiler_params=pltpu.CompilerParams(
            dimension_semantics=("parallel",)),
    )(x_stk, w_fused, mask)

    # ---- finish BN statistics (training mode: biased batch variance) -------
    cnt = float(N * 4 * H * W)                       # == N * (2H) * (2W)
    s = jnp.sum(stats[:, :, 0].reshape(N, 4, Cout), axis=(0, 1))
    ss = jnp.sum(stats[:, :, 1].reshape(N, 4, Cout), axis=(0, 1))
    mean = s / cnt
    var = ss / cnt - mean * mean                     # keep this path in f32
    inv = gamma.astype(jnp.float32) * jax.lax.rsqrt(var + eps)
    scale_t = jnp.tile(inv, 4).reshape(4 * Cout, 1)
    shift_t = jnp.tile(beta.astype(jnp.float32) - mean * inv, 4).reshape(4 * Cout, 1)

    # ------------------------------------------------------------------
    # Kernel 2: scale*x + shift + ReLU, one batch element per step, in place.
    # ------------------------------------------------------------------
    def bn_relu_kernel(y_ref, sc_ref, sh_ref, o_ref):
        o_ref[...] = jnp.maximum(y_ref[...] * sc_ref[...] + sh_ref[...], 0.0)

    ynorm = pl.pallas_call(
        bn_relu_kernel,
        out_shape=jax.ShapeDtypeStruct((N, 4 * Cout, L), jnp.float32),
        grid=(N,),
        in_specs=[
            pl.BlockSpec((None, 4 * Cout, L), lambda n: (n, 0, 0)),
            pl.BlockSpec((4 * Cout, 1), lambda n: (0, 0)),
            pl.BlockSpec((4 * Cout, 1), lambda n: (0, 0)),
        ],
        out_specs=pl.BlockSpec((None, 4 * Cout, L), lambda n: (n, 0, 0)),
        input_output_aliases={0: 0},                 # normalize in place
        compiler_params=pltpu.CompilerParams(
            dimension_semantics=("parallel",)),
    )(yconv, scale_t, shift_t)

    # ---- phase-major -> NCHW pixel interleave -------------------------------
    # TODO(synk): the stride-2 pixel interleave is left to one cheap XLA
    # transpose; an element-granularity lane interleave (stride-2 lane stores)
    # has no clean / portable Pallas TPU win at this size.
    y6 = ynorm.reshape(N, 2, 2, Cout, H, Wp)
    out = jnp.transpose(y6, (0, 3, 4, 1, 5, 2))[:, :, :, :, :W, :]
    return out.reshape(N, Cout, 2 * H, 2 * W)


def reference(x, w_oihw, b, gamma, beta, eps=1e-5):
    # pure-JAX reference of the same forward pass (NCHW throughout)
    xu = jnp.repeat(jnp.repeat(x, 2, axis=2), 2, axis=3)
    y = jax.lax.conv_general_dilated(
        xu, w_oihw, window_strides=(1, 1), padding="SAME",
        dimension_numbers=("NCHW", "OIHW", "NCHW"))
    y = y + b.reshape(1, -1, 1, 1)
    mean = jnp.mean(y, axis=(0, 2, 3), keepdims=True)
    var = jnp.mean((y - mean) ** 2, axis=(0, 2, 3), keepdims=True)
    y = (y - mean) * jax.lax.rsqrt(var + eps) * gamma.reshape(1, -1, 1, 1) \
        + beta.reshape(1, -1, 1, 1)
    return jnp.maximum(y, 0.0)


if __name__ == "__main__":
    # UpConv(ch_in=4, ch_out=8) applied to x of shape (N=2, C=4, H=16, W=16)
    N, Cin, Cout, H, W = 2, 4, 8, 16, 16

    key = jax.random.PRNGKey(0)
    kx, kw, kb = jax.random.split(key, 3)

    x = jax.random.normal(kx, (N, Cin, H, W), dtype=jnp.float32)

    # Deterministic parameter init mimicking PyTorch Conv2d defaults (OIHW).
    fan_in = Cin * 3 * 3
    bound = 1.0 / (fan_in ** 0.5)
    w = jax.random.uniform(kw, (Cout, Cin, 3, 3), jnp.float32,
                           minval=-bound, maxval=bound)
    b = jax.random.uniform(kb, (Cout,), jnp.float32,
                           minval=-bound, maxval=bound)
    gamma = jnp.ones((Cout,), jnp.float32)   # BatchNorm weight
    beta = jnp.zeros((Cout,), jnp.float32)   # BatchNorm bias

    out = jax.block_until_ready(up_conv_forward(x, w, b, gamma, beta))
    ref = jax.block_until_ready(reference(x, w, b, gamma, beta))

    assert out.shape == (N, Cout, 2 * H, 2 * W)
    assert jnp.allclose(out, ref, atol=1e-4, rtol=1e-4)

    print("KERNEL_OK")
</pallas_src>

<mosaic_0001>
module attributes {stable_mosaic.version = 11 : i64} {
  func.func @conv_kernel(%arg0: i32, %arg1: memref<1x40x256xf32, #tpu.memory_space<vmem>>, %arg2: memref<32x40xf32, #tpu.memory_space<vmem>>, %arg3: memref<1x256xf32, #tpu.memory_space<vmem>>, %arg4: memref<1x32x256xf32, #tpu.memory_space<vmem>>, %arg5: memref<1x32x2xf32, #tpu.memory_space<vmem>>) attributes {dimension_semantics = [#tpu.dimension_semantics<parallel>], iteration_bounds = array<i64: 2>, scalar_prefetch = 0 : i64, scratch_operands = 0 : i64, tpu.core_type = #tpu.core_type<tc>, window_params = [{transform_indices = @transform_0, window_bounds = array<i64: 1, 40, 256>}, {pipeline_mode = #tpu.pipeline_mode<synchronous>, transform_indices = @transform_1, window_bounds = array<i64: 32, 40>}, {pipeline_mode = #tpu.pipeline_mode<synchronous>, transform_indices = @transform_2, window_bounds = array<i64: 1, 256>}, {transform_indices = @transform_3, window_bounds = array<i64: 1, 32, 256>}, {transform_indices = @transform_4, window_bounds = array<i64: 1, 32, 2>}]} {
    %c0 = arith.constant 0 : index
    %c0_0 = arith.constant 0 : index
    %0 = vector.load %arg2[%c0, %c0_0] : memref<32x40xf32, #tpu.memory_space<vmem>>, vector<32x40xf32>
    %c0_1 = arith.constant 0 : index
    %c0_2 = arith.constant 0 : index
    %c0_3 = arith.constant 0 : index
    %1 = vector.load %arg1[%c0_1, %c0_2, %c0_3] : memref<1x40x256xf32, #tpu.memory_space<vmem>>, vector<1x40x256xf32>
    %2 = vector.shape_cast %1 : vector<1x40x256xf32> to vector<40x256xf32>
    %cst = arith.constant dense<0.000000e+00> : vector<32x256xf32>
    %3 = tpu.matmul %0, %2, %cst {dimension_numbers = #tpu.dot_dimension_numbers<[1], [0], [0], [1], [0, 0, 1, 1], [], []>} : vector<32x40xf32>, vector<40x256xf32>, vector<32x256xf32> -> vector<32x256xf32>
    %c0_4 = arith.constant 0 : index
    %c0_5 = arith.constant 0 : index
    %c0_6 = arith.constant 0 : index
    %4 = vector.load %arg4[%c0_4, %c0_5, %c0_6] : memref<1x32x256xf32, #tpu.memory_space<vmem>>, vector<1x32x256xf32>
    %5 = vector.shape_cast %4 : vector<1x32x256xf32> to vector<32x256xf32>
    %6 = vector.shape_cast %3 : vector<32x256xf32> to vector<1x32x256xf32>
    tpu.vector_store %arg4[%c0_4, %c0_5, %c0_6], %6 {strides = array<i32>} : memref<1x32x256xf32, #tpu.memory_space<vmem>>, vector<1x32x256xf32>,
    %c0_7 = arith.constant 0 : index
    %c0_8 = arith.constant 0 : index
    %7 = vector.load %arg3[%c0_7, %c0_8] : memref<1x256xf32, #tpu.memory_space<vmem>>, vector<1x256xf32>
    %8 = vector.broadcast %7 : vector<1x256xf32> to vector<32x256xf32>
    %9 = arith.mulf %3, %8 : vector<32x256xf32>
    %cst_9 = arith.constant dense<0.000000e+00> : vector<32xf32>
    %10 = vector.multi_reduction <add>, %9, %cst_9 [1] : vector<32x256xf32> to vector<32xf32>
    %11 = vector.shape_cast %10 : vector<32xf32> to vector<32x1xf32>
    %c0_10 = arith.constant 0 : index
    %c0_11 = arith.constant 0 : index
    %c0_12 = arith.constant 0 : index
    %12 = vector.load %arg5[%c0_10, %c0_11, %c0_12] : memref<1x32x2xf32, #tpu.memory_space<vmem>>, vector<1x32x1xf32>
    %13 = vector.shape_cast %12 : vector<1x32x1xf32> to vector<32x1xf32>
    %14 = vector.shape_cast %11 : vector<32x1xf32> to vector<1x32x1xf32>
    tpu.vector_store %arg5[%c0_10, %c0_11, %c0_12], %14 {strides = array<i32>} : memref<1x32x2xf32, #tpu.memory_space<vmem>>, vector<1x32x1xf32>,
    %15 = arith.mulf %9, %3 : vector<32x256xf32>
    %cst_13 = arith.constant dense<0.000000e+00> : vector<32xf32>
    %16 = vector.multi_reduction <add>, %15, %cst_13 [1] : vector<32x256xf32> to vector<32xf32>
    %17 = vector.shape_cast %16 : vector<32xf32> to vector<32x1xf32>
    %c0_14 = arith.constant 0 : index
    %c0_15 = arith.constant 0 : index
    %c1 = arith.constant 1 : index
    %18 = vector.load %arg5[%c0_14, %c0_15, %c1] : memref<1x32x2xf32, #tpu.memory_space<vmem>>, vector<1x32x1xf32>
    %19 = vector.shape_cast %18 : vector<1x32x1xf32> to vector<32x1xf32>
    %20 = vector.shape_cast %17 : vector<32x1xf32> to vector<1x32x1xf32>
    tpu.vector_store %arg5[%c0_14, %c0_15, %c1], %20 {strides = array<i32>} : memref<1x32x2xf32, #tpu.memory_space<vmem>>, vector<1x32x1xf32>,
    return
  }
  func.func @transform_0(%arg0: i32) -> (i32, i32, i32) {
    %c0_i32 = arith.constant 0 : i32
    %c0_i32_0 = arith.constant 0 : i32
    %c0_i32_1 = arith.constant 0 : i32
    return %arg0, %c0_i32, %c0_i32_0 : i32, i32, i32
  }
  func.func @transform_1(%arg0: i32) -> (i32, i32) {
    %c0_i32 = arith.constant 0 : i32
    %c0_i32_0 = arith.constant 0 : i32
    %c0_i32_1 = arith.constant 0 : i32
    return %c0_i32, %c0_i32_0 : i32, i32
  }
  func.func @transform_2(%arg0: i32) -> (i32, i32) {
    %c0_i32 = arith.constant 0 : i32
    %c0_i32_0 = arith.constant 0 : i32
    %c0_i32_1 = arith.constant 0 : i32
    return %c0_i32, %c0_i32_0 : i32, i32
  }
  func.func @transform_3(%arg0: i32) -> (i32, i32, i32) {
    %c0_i32 = arith.constant 0 : i32
    %c0_i32_0 = arith.constant 0 : i32
    %c0_i32_1 = arith.constant 0 : i32
    return %arg0, %c0_i32, %c0_i32_0 : i32, i32, i32
  }
  func.func @transform_4(%arg0: i32) -> (i32, i32, i32) {
    %c0_i32 = arith.constant 0 : i32
    %c0_i32_0 = arith.constant 0 : i32
    %c0_i32_1 = arith.constant 0 : i32
    return %arg0, %c0_i32, %c0_i32_0 : i32, i32, i32
  }
}

module attributes {stable_mosaic.version = 11 : i64} {
  func.func @bn_relu_kernel(%arg0: i32, %arg1: memref<1x32x256xf32, #tpu.memory_space<vmem>>, %arg2: memref<32x1xf32, #tpu.memory_space<vmem>>, %arg3: memref<32x1xf32, #tpu.memory_space<vmem>>, %arg4: memref<1x32x256xf32, #tpu.memory_space<vmem>>) attributes {dimension_semantics = [#tpu.dimension_semantics<parallel>], iteration_bounds = array<i64: 2>, scalar_prefetch = 0 : i64, scratch_operands = 0 : i64, tpu.core_type = #tpu.core_type<tc>, window_params = [{transform_indices = @transform_0, window_bounds = array<i64: 1, 32, 256>}, {pipeline_mode = #tpu.pipeline_mode<synchronous>, transform_indices = @transform_1, window_bounds = array<i64: 32, 1>}, {pipeline_mode = #tpu.pipeline_mode<synchronous>, transform_indices = @transform_2, window_bounds = array<i64: 32, 1>}, {transform_indices = @transform_3, window_bounds = array<i64: 1, 32, 256>}]} {
    %c0 = arith.constant 0 : index
    %c0_0 = arith.constant 0 : index
    %c0_1 = arith.constant 0 : index
    %0 = vector.load %arg1[%c0, %c0_0, %c0_1] : memref<1x32x256xf32, #tpu.memory_space<vmem>>, vector<1x32x256xf32>
    %1 = vector.shape_cast %0 : vector<1x32x256xf32> to vector<32x256xf32>
    %c0_2 = arith.constant 0 : index
    %c0_3 = arith.constant 0 : index
    %2 = vector.load %arg2[%c0_2, %c0_3] : memref<32x1xf32, #tpu.memory_space<vmem>>, vector<32x1xf32>
    %3 = vector.broadcast %2 : vector<32x1xf32> to vector<32x256xf32>
    %4 = arith.mulf %1, %3 : vector<32x256xf32>
    %c0_4 = arith.constant 0 : index
    %c0_5 = arith.constant 0 : index
    %5 = vector.load %arg3[%c0_4, %c0_5] : memref<32x1xf32, #tpu.memory_space<vmem>>, vector<32x1xf32>
    %6 = vector.broadcast %5 : vector<32x1xf32> to vector<32x256xf32>
    %7 = arith.addf %4, %6 : vector<32x256xf32>
    %cst = arith.constant 0.000000e+00 : f32
    %8 = vector.broadcast %cst : f32 to vector<32x256xf32>
    %9 = arith.maximumf %7, %8 : vector<32x256xf32>
    %c0_6 = arith.constant 0 : index
    %c0_7 = arith.constant 0 : index
    %c0_8 = arith.constant 0 : index
    %10 = vector.load %arg4[%c0_6, %c0_7, %c0_8] : memref<1x32x256xf32, #tpu.memory_space<vmem>>, vector<1x32x256xf32>
    %11 = vector.shape_cast %10 : vector<1x32x256xf32> to vector<32x256xf32>
    %12 = vector.shape_cast %9 : vector<32x256xf32> to vector<1x32x256xf32>
    tpu.vector_store %arg4[%c0_6, %c0_7, %c0_8], %12 {strides = array<i32>} : memref<1x32x256xf32, #tpu.memory_space<vmem>>, vector<1x32x256xf32>,
    return
  }
  func.func @transform_0(%arg0: i32) -> (i32, i32, i32) {
    %c0_i32 = arith.constant 0 : i32
    %c0_i32_0 = arith.constant 0 : i32
    %c0_i32_1 = arith.constant 0 : i32
    return %arg0, %c0_i32, %c0_i32_0 : i32, i32, i32
  }
  func.func @transform_1(%arg0: i32) -> (i32, i32) {
    %c0_i32 = arith.constant 0 : i32
    %c0_i32_0 = arith.constant 0 : i32
    %c0_i32_1 = arith.constant 0 : i32
    return %c0_i32, %c0_i32_0 : i32, i32
  }
  func.func @transform_2(%arg0: i32) -> (i32, i32) {
    %c0_i32 = arith.constant 0 : i32
    %c0_i32_0 = arith.constant 0 : i32
    %c0_i32_1 = arith.constant 0 : i32
    return %c0_i32, %c0_i32_0 : i32, i32
  }
  func.func @transform_3(%arg0: i32) -> (i32, i32, i32) {
    %c0_i32 = arith.constant 0 : i32
    %c0_i32_0 = arith.constant 0 : i32
    %c0_i32_1 = arith.constant 0 : i32
    return %arg0, %c0_i32, %c0_i32_0 : i32, i32, i32
  }
}

</mosaic_0001>

<llo_original>
// kernel: tile.18
$region0: #{tile.18}
  #allocation2 [shape = 's32[1]{0}', space=sflag, size = 0x4, scoped, tag = 'scoped memory for tile.18']
  %s0 = inlined_call_operand.hbm [shape: f32[8], index: 0, kind: input, shape index: {}]
  %s1 = inlined_call_operand.vmem [shape: f32[4,8], index: 1, kind: output, shape index: {}]
  $region1: #{tile.18} parent=0
    #allocation0 [shape = 'u8[512]{0}', space=vmem, size = 0x400, scoped, tag = 'operand span for operand 0']
    #allocation1 [shape = 's32[1]{0}', space=sflag, size = 0x4, scoped, tag = 'scoped memory for tile.18']
    %2 = vsyncpa [#allocation1], 0
    // Predicated region
    $region2: #{tile.18} parent=1 // pred_check
      _
    $region3: #{tile.18} parent=1 // pred_check_branch
      %4 = sbr.rel (0) target = $region5
    $region4: #{tile.18} parent=1 // pred_region
      %s6 = ssub.s32 16, 16
      %7 = vsyncadd [#allocation1], %s6
      %s9 = sshll.u32 [#allocation0], 4
      %s10 = int_to_ptr.vmem [resolvable:$true] %s9
      %12 = dma.hbm_to_vmem [thread:$0]  %s0, 16, %s10, [#allocation1]
    $region5: #{tile.18} parent=1 // pred_fallthru
      _
    // Predicated region
    $region6: #{tile.18} parent=1 // pred_check
      _
    $region7: #{tile.18} parent=1 // pred_check_branch
      %14 = sbr.rel (0) target = $region9
    $region8: #{tile.18} parent=1 // pred_region
      %15 = dma.done [#allocation1], 16
    $region9: #{tile.18} parent=1 // pred_fallthru
      _
    %v16 = vld [vmem:[#allocation0] ss:$0 sm:$0xff]
    %17 = vst [vmem:[%s1] sm:$0xf] %v16
    %18 = vsyncpa [#allocation1], 1

// kernel: tile.0
$region0: #{tile.0}
  %s0 = inlined_call_operand.vmem [shape: f32[4,8], index: 0, kind: input, shape index: {}]
  %s1 = inlined_call_operand.vmem [shape: f32[32,1], index: 1, kind: output, shape index: {}]
  $region1: #{tile.0} parent=0
    #allocation0 [shape = 'u8[4096]{0}', space=vmem, size = 0x1000, scoped, tag = 'scoped mem for input reshape']
    %s3 = sshllo.u32 0, 4
    %v4 = vld [vmem:[%s0] sm:%s3]
    %5 = vst [vmem:[#allocation0] sm:%s3] %v4
    %v6 = vld [vmem:[#allocation0] sm:$0xf]
    %vm7 = vcmask 7168
    %8 = vst.msk [vmem:[%s1] ss:$8 sm:$0xf] %vm7, %v6
    %v9 = vld [vmem:[#allocation0] sm:$0xf]
    %10 = vrot.lane.b32.xlu0 %v9, 127
    %v11 = vpop.permute.xlu0 %10
    %vm12 = vcmask 7168
    %s13 = scalar_lea.vmem %s1, 1
    %14 = vst.msk [vmem:[%s13] ss:$8 sm:$0xf] %vm12, %v11
    %v15 = vld [vmem:[#allocation0] sm:$0xf]
    %16 = vrot.lane.b32.xlu0 %v15, 126
    %v17 = vpop.permute.xlu0 %16
    %vm18 = vcmask 7168
    %s19 = scalar_lea.vmem %s1, 2
    %20 = vst.msk [vmem:[%s19] ss:$8 sm:$0xf] %vm18, %v17
    %v21 = vld [vmem:[#allocation0] sm:$0xf]
    %22 = vrot.lane.b32.xlu0 %v21, 125
    %v23 = vpop.permute.xlu0 %22
    %vm24 = vcmask 7168
    %s25 = scalar_lea.vmem %s1, 3
    %26 = vst.msk [vmem:[%s25] ss:$8 sm:$0xf] %vm24, %v23
    %v27 = vld [vmem:[#allocation0] sm:$0xf]
    %28 = vrot.lane.b32.xlu0 %v27, 124
    %v29 = vpop.permute.xlu0 %28
    %vm30 = vcmask 7168
    %s31 = scalar_lea.vmem %s1, 4
    %32 = vst.msk [vmem:[%s31] ss:$8 sm:$0xf] %vm30, %v29
    %v33 = vld [vmem:[#allocation0] sm:$0xf]
    %34 = vrot.lane.b32.xlu0 %v33, 123
    %v35 = vpop.permute.xlu0 %34
    %vm36 = vcmask 7168
    %s37 = scalar_lea.vmem %s1, 5
    %38 = vst.msk [vmem:[%s37] ss:$8 sm:$0xf] %vm36, %v35
    %v39 = vld [vmem:[#allocation0] sm:$0xf]
    %40 = vrot.lane.b32.xlu0 %v39, 122
    %v41 = vpop.permute.xlu0 %40
    %vm42 = vcmask 7168
    %s43 = scalar_lea.vmem %s1, 6
    %44 = vst.msk [vmem:[%s43] ss:$8 sm:$0xf] %vm42, %v41
    %v45 = vld [vmem:[#allocation0] sm:$0xf]
    %46 = vrot.lane.b32.xlu0 %v45, 121
    %v47 = vpop.permute.xlu0 %46
    %vm48 = vcmask 7168
    %s49 = scalar_lea.vmem %s1, 7
    %50 = vst.msk [vmem:[%s49] ss:$8 sm:$0xf] %vm48, %v47

// kernel: tile.28
$region0: #{tile.28}
  #allocation0 [shape = 's32[1]{0}', space=sflag, size = 0x4, scoped, tag = 'scoped memory for tile.28']
  %s0 = inlined_call_operand.vmem [shape: f32[8], index: 0, kind: input, shape index: {}]
  %s1 = inlined_call_operand.vmem [shape: f32[4,8], index: 1, kind: output, shape index: {}]
  // Predicated region
  $region2: #{tile.28} parent=0 // pred_check
    _
  $region3: #{tile.28} parent=0 // pred_check_branch
    %3 = sbr.rel (0) target = $region5
  $region4: #{tile.28} parent=0 // pred_region
    _
  $region5: #{tile.28} parent=0 // pred_fallthru
    _
  %v4 = vld [vmem:[%s0] ss:$0 sm:$0xff]
  %5 = vst [vmem:[%s1] sm:$0xf] %v4

// kernel: up_conv_forward.2
$region0: #{up_conv_forward.2}
  #allocation0 [shape = 'u32[]', space=smem, size = 0x4, offset = 0x4, fixed_abs, tag = 'smem constant byte address 0x4 - core index']
  #allocation1 [shape = 'u32[144,128]{1,0:T(1,128)}', space=vmem, size = 0x12000, scoped, tag = 'internal scratch']
  %s0 = inlined_call_operand.vmem [shape: f32[2,40,256], index: 0, kind: input, shape index: {}]
  %s1 = inlined_call_operand.vmem [shape: f32[32,40], index: 1, kind: input, shape index: {}]
  %s2 = inlined_call_operand.vmem [shape: f32[1,256], index: 2, kind: input, shape index: {}]
  %s3 = inlined_call_operand.vmem [shape: f32[2,32,256], index: 3, kind: output, shape index: {0}]
  %s4 = inlined_call_operand.vmem [shape: f32[2,32,2], index: 4, kind: output, shape index: {1}]
  %5 = xla_tuple %s3, %s4
  %s6 = sld [smem:[#allocation0]]
  $region53: #{up_conv_forward.2} parent=0
    _
  %s8 = ssub.s32 1, %s6
  %s9 = scalar_select 0, %s8, %s6
  loop: start=0, step=1, limit=4
  $region2: #{up_conv_forward.2} parent=0 // loop_pre_header
    _
  $region3: #{up_conv_forward.2} parent=0 // loop_header
    %s11 = sphi 0, %s15
    %p12 = scmp.ge.s32.totalorder %s11, 4
    %s21 = sphi 0, %s23
    %s24 = sphi 0, %s21
    %s25 = sphi 0, %s24
    %s41 = sphi 0, %s25
    %s45 = sphi 0, %s45
    %s47 = sphi 0, %s45
    %s48 = sphi 0, %s47
    %s62 = sphi 0, %s48
    %s66 = sphi 0, %s66
    %s68 = sphi 0, %s66
    %s69 = sphi 0, %s68
    %s83 = sphi 0, %s69
    %s89 = sphi 0, %s91
    %s92 = sphi 0, %s89
    %s93 = sphi 0, %s92
    %s109 = sphi 0, %s93
    %s115 = sphi 0, %s117
    %s118 = sphi 0, %s115
    %s119 = sphi 0, %s118
    %s135 = sphi 0, %s119
  $region4: #{up_conv_forward.2} parent=0 // loop_header_branch
    %14 = sbr.rel (%p12) target = $region8
  $region5: #{up_conv_forward.2} parent=0 // loop_body
    %s16 = ssub.s32 %s11, 1
    %s17 = ssub.s32 %s11, 2
    %s18 = sadd.s32 %s11, 1
    %s19 = ssub.s32 %s11, %s18
    %p20 = scmp.eq.s32.totalorder %s19, 0
    %s22 = sadd.s32 %s21, 1
    %s23 = scalar_select %p20, %s21, %s22
    %p26 = pneg %p20
    %p27 = scmp.eq.s32.totalorder %s11, 1
    %p28 = por %p26, %p27
    %p29 = scmp.ne.s32.totalorder %s21, %s24
    %p30 = scmp.eq.s32.totalorder %s11, 0
    %p31 = por %p29, %p30
    %p32 = scmp.ne.s32.totalorder %s21, %s24
    %p33 = scmp.eq.s32.totalorder %s16, 1
    %p34 = por %p32, %p33
    %p35 = scmp.ne.s32.totalorder %s24, %s25
    %p36 = scmp.eq.s32.totalorder %s16, 0
    %p37 = por %p35, %p36
    %p38 = scmp.ne.s32.totalorder %s24, %s25
    %p39 = scmp.eq.s32.totalorder %s17, 1
    %p40 = por %p38, %p39
    %p42 = scmp.ne.s32.totalorder %s25, %s41
    %p43 = scmp.eq.s32.totalorder %s17, 0
    %p44 = por %p42, %p43
    %s46 = sadd.s32 %s45, 1
    %p49 = scmp.eq.s32.totalorder %s11, 1
    %p50 = scmp.ne.s32.totalorder %s45, %s47
    %p51 = scmp.eq.s32.totalorder %s11, 0
    %p52 = por %p50, %p51
    %p53 = scmp.ne.s32.totalorder %s45, %s47
    %p54 = scmp.eq.s32.totalorder %s16, 1
    %p55 = por %p53, %p54
    %p56 = scmp.ne.s32.totalorder %s47, %s48
    %p57 = scmp.eq.s32.totalorder %s16, 0
    %p58 = por %p56, %p57
    %p59 = scmp.ne.s32.totalorder %s47, %s48
    %p60 = scmp.eq.s32.totalorder %s17, 1
    %p61 = por %p59, %p60
    %p63 = scmp.ne.s32.totalorder %s48, %s62
    %p64 = scmp.eq.s32.totalorder %s17, 0
    %p65 = por %p63, %p64
    %s67 = sadd.s32 %s66, 1
    %p70 = scmp.eq.s32.totalorder %s11, 1
    %p71 = scmp.ne.s32.totalorder %s66, %s68
    %p72 = scmp.eq.s32.totalorder %s11, 0
    %p73 = por %p71, %p72
    %p74 = scmp.ne.s32.totalorder %s66, %s68
    %p75 = scmp.eq.s32.totalorder %s16, 1
    %p76 = por %p74, %p75
    %p77 = scmp.ne.s32.totalorder %s68, %s69
    %p78 = scmp.eq.s32.totalorder %s16, 0
    %p79 = por %p77, %p78
    %p80 = scmp.ne.s32.totalorder %s68, %s69
    %p81 = scmp.eq.s32.totalorder %s17, 1
    %p82 = por %p80, %p81
    %p84 = scmp.ne.s32.totalorder %s69, %s83
    %p85 = scmp.eq.s32.totalorder %s17, 0
    %p86 = por %p84, %p85
    %s87 = ssub.s32 %s11, %s18
    %p88 = scmp.eq.s32.totalorder %s87, 0
    %s90 = sadd.s32 %s89, 1
    %s91 = scalar_select %p88, %s89, %s90
    %p94 = pneg %p88
    %p95 = scmp.eq.s32.totalorder %s11, 1
    %p96 = por %p94, %p95
    %p97 = scmp.ne.s32.totalorder %s89, %s92
    %p98 = scmp.eq.s32.totalorder %s11, 0
    %p99 = por %p97, %p98
    %p100 = scmp.ne.s32.totalorder %s89, %s92
    %p101 = scmp.eq.s32.totalorder %s16, 1
    %p102 = por %p100, %p101
    %p103 = scmp.ne.s32.totalorder %s92, %s93
    %p104 = scmp.eq.s32.totalorder %s16, 0
    %p105 = por %p103, %p104
    %p106 = scmp.ne.s32.totalorder %s92, %s93
    %p107 = scmp.eq.s32.totalorder %s17, 1
    %p108 = por %p106, %p107
    %p110 = scmp.ne.s32.totalorder %s93, %s109
    %p111 = scmp.eq.s32.totalorder %s17, 0
    %p112 = por %p110, %p111
    %s113 = ssub.s32 %s11, %s18
    %p114 = scmp.eq.s32.totalorder %s113, 0
    %s116 = sadd.s32 %s115, 1
    %s117 = scalar_select %p114, %s115, %s116
    %p120 = pneg %p114
    %p121 = scmp.eq.s32.totalorder %s11, 1
    %p122 = por %p120, %p121
    %p123 = scmp.ne.s32.totalorder %s115, %s118
    %p124 = scmp.eq.s32.totalorder %s11, 0
    %p125 = por %p123, %p124
    %p126 = scmp.ne.s32.totalorder %s115, %s118
    %p127 = scmp.eq.s32.totalorder %s16, 1
    %p128 = por %p126, %p127
    %p129 = scmp.ne.s32.totalorder %s118, %s119
    %p130 = scmp.eq.s32.totalorder %s16, 0
    %p131 = por %p129, %p130
    %p132 = scmp.ne.s32.totalorder %s118, %s119
    %p133 = scmp.eq.s32.totalorder %s17, 1
    %p134 = por %p132, %p133
    %p136 = scmp.ne.s32.totalorder %s119, %s135
    %p137 = scmp.eq.s32.totalorder %s17, 0
    %p138 = por %p136, %p137
    %p139 = scmp.le.s32.totalorder 1, %s11
    %p140 = scmp.lt.s32.totalorder %s11, 3
    %p141 = pnand %p139, %p140
    %p142 = pneg %p141
    // Predicated region
    $region9: #{up_conv_forward.2} parent=5 // pred_check
      _
    $region10: #{up_conv_forward.2} parent=5 // pred_check_branch
      %144 = sbr.rel (%p141) target = $region12
    $region11: #{up_conv_forward.2} parent=5 // pred_region
      %s145 = ssub.s32 %s11, 1
      // Predicated region
      $region13: #{up_conv_forward.2} parent=11 // pred_check
        %p146 = pneg %p58
      $region14: #{up_conv_forward.2} parent=11 // pred_check_branch
        %148 = sbr.rel (%p146) target = $region16
      $region15: #{up_conv_forward.2} parent=11 // pred_region
        _
      $region16: #{up_conv_forward.2} parent=11 // pred_fallthru
        _
      // Predicated region
      $region17: #{up_conv_forward.2} parent=11 // pred_check
        %p149 = pneg %p79
      $region18: #{up_conv_forward.2} parent=11 // pred_check_branch
        %151 = sbr.rel (%p149) target = $region20
      $region19: #{up_conv_forward.2} parent=11 // pred_region
        _
      $region20: #{up_conv_forward.2} parent=11 // pred_fallthru
        _
    $region12: #{up_conv_forward.2} parent=5 // pred_fallthru
      _
    %p152 = scmp.lt.s32.totalorder %s11, 2
    // Predicated region
    $region21: #{up_conv_forward.2} parent=5 // pred_check
      %p153 = pneg %p152
    $region22: #{up_conv_forward.2} parent=5 // pred_check_branch
      %155 = sbr.rel (%p153) target = $region24
    $region23: #{up_conv_forward.2} parent=5 // pred_region
      // Predicated region
      $region25: #{up_conv_forward.2} parent=23 // pred_check
        %p156 = pneg %p31
      $region26: #{up_conv_forward.2} parent=23 // pred_check_branch
        %158 = sbr.rel (%p156) target = $region28
      $region27: #{up_conv_forward.2} parent=23 // pred_region
        %p159 = scmp.lt.s32.totalorder %s11, 1
        %s160 = scalar_select %p159, %s11, 1
        %s161 = smul.addr %s160, 10
        %s162 = smul.addr %s161, 8
        %s163 = scalar_lea.vmem %s0, %s162
      $region28: #{up_conv_forward.2} parent=23 // pred_fallthru
        _
    $region24: #{up_conv_forward.2} parent=5 // pred_fallthru
      _
    %p164 = scmp.le.s32.totalorder 1, %s11
    %p165 = scmp.lt.s32.totalorder %s11, 3
    %p166 = pnand %p164, %p165
    %p167 = pneg %p166
    // Predicated region
    $region29: #{up_conv_forward.2} parent=5 // pred_check
      _
    $region30: #{up_conv_forward.2} parent=5 // pred_check_branch
      %169 = sbr.rel (%p166) target = $region32
    $region31: #{up_conv_forward.2} parent=5 // pred_region
      %s170 = ssub.s32 %s11, 1
      %p171 = scmp.lt.s32.totalorder %s16, 1
      %s172 = scalar_select %p171, %s16, 1
      %s173 = smul.addr %s172, 10
      %s174 = smul.addr %s173, 8
      %s175 = scalar_lea.vmem %s0, %s174
      %p176 = pneg %p37
      %p177 = pneg %p34
      %p178 = pneg %p58
      %p179 = pneg %p55
      %p180 = pneg %p79
      %p181 = pneg %p76
      %p182 = pneg %p105
      %p183 = pneg %p102
      %p184 = scmp.lt.s32.totalorder %s16, 1
      %s185 = scalar_select %p184, %s16, 1
      %s186 = smul.addr %s185, 8
      %s187 = smul.addr %s186, 8
      %s188 = scalar_lea.vmem %s3, %s187
      %p189 = pneg %p131
      %p190 = pneg %p128
      %p191 = scmp.lt.s32.totalorder %s16, 1
      %s192 = scalar_select %p191, %s16, 1
      %s193 = smul.addr %s192, 4
      %s194 = smul.addr %s193, 8
      %s195 = scalar_lea.vmem %s4, %s194
      %p196 = scmp.lt.s32.totalorder %s16, 1
      %s197 = scalar_select %p196, %s16, 1
      %s198 = smul.addr %s197, 10
      %s199 = smul.addr %s198, 8
      %s200 = scalar_lea.vmem %s0, %s199
      %p201 = scmp.lt.s32.totalorder %s16, 1
      %s202 = scalar_select %p201, %s16, 1
      %s203 = smul.addr %s202, 8
      %s204 = smul.addr %s203, 8
      %s205 = scalar_lea.vmem %s3, %s204
      %p206 = scmp.lt.s32.totalorder %s16, 1
      %s207 = scalar_select %p206, %s16, 1
      %s208 = smul.addr %s207, 4
      %s209 = smul.addr %s208, 8
      %s210 = scalar_lea.vmem %s4, %s209
      %v211 = vld [vmem:[%s1] sm:$0xff]
      %v212 = vld [vmem:[%s1 + $0x8] sm:$0xff]
      %v213 = vld [vmem:[%s1 + $0x10] sm:$0xff]
      %v214 = vld [vmem:[%s1 + $0x18] sm:$0xff]
      %v215 = vld [vmem:[%s200] sm:$0xff]
      %v216 = vld [vmem:[%s200 + $0x8] sm:$0xff]
      %v217 = vld [vmem:[%s200 + $0x10] sm:$0xff]
      %v218 = vld [vmem:[%s200 + $0x18] sm:$0xff]
      %v219 = vld [vmem:[%s200 + $0x20] sm:$0xff]
      %v220 = vld [vmem:[%s200 + $0x28] sm:$0xff]
      %v221 = vld [vmem:[%s200 + $0x30] sm:$0xff]
      %v222 = vld [vmem:[%s200 + $0x38] sm:$0xff]
      %v223 = vld [vmem:[%s200 + $0x40] sm:$0xff]
      %v224 = vld [vmem:[%s200 + $0x48] sm:$0xff]
      %vm225 = vcmask 326656
      %v227 = vsel %vm225, %v211, 0
      %v230 = vsel %vm225, %v212, 0
      %v233 = vsel %vm225, %v213, 0
      %v236 = vsel %vm225, %v214, 0
      %238 = vmatprep.subr.mxu0 %v216
      %239 = vmatpush1.msra.mxu0 %v215
      %240 = vmatprep.subr.mxu0 %v218
      %241 = vmatpush1.msra.mxu0 %v217
      %242 = vmatprep.subr.mxu0 %v220
      %243 = vmatpush1.msra.mxu0 %v219
      %244 = vmatprep.subr.mxu0 %v222
      %245 = vmatpush1.msra.mxu0 %v221
      %246 = vmatprep.subr.mxu0 %v224
      %247 = vmatpush1.msra.mxu0 %v223
      %248 = vmatprep.subr.mxu0 0.0
      %249 = vmatpush1.msra.mxu0 0.0
      %250 = vmatprep.subr.mxu0 0.0
      %251 = vmatpush1.msra.mxu0 0.0
      %252 = vmatprep.subr.mxu0 0.0
      %253 = vmatpush1.msra.mxu0 0.0
      %254 = vmatprep.subr.mxu0 0.0
      %255 = vmatpush1.msra.mxu0 0.0
      %256 = vmatprep.subr.mxu0 0.0
      %257 = vmatpush1.msra.mxu0 0.0
      %258 = vmatprep.subr.mxu0 0.0
      %259 = vmatpush1.msra.mxu0 0.0
      %260 = vmatprep.subr.mxu0 0.0
      %261 = vmatpush1.msra.mxu0 0.0
      %262 = vmatprep.subr.mxu0 0.0
      %263 = vmatpush1.msra.mxu0 0.0
      %264 = vmatprep.subr.mxu0 0.0
      %265 = vmatpush1.msra.mxu0 0.0
      %266 = vmatprep.subr.mxu0 0.0
      %267 = vmatpush1.msra.mxu0 0.0
      %268 = vmatprep.subr.mxu0 0.0
      %269 = vmatpush1.msra.mxu0 0.0
      %270 = vmatprep.subr.mxu0 0.0
      %271 = vmatpush1.msra.mxu0 0.0
      %272 = vmatprep.subr.mxu0 0.0
      %273 = vmatpush1.msra.mxu0 0.0
      %274 = vmatprep.subr.mxu0 0.0
      %275 = vmatpush1.msra.mxu0 0.0
      %276 = vmatprep.subr.mxu0 0.0
      %277 = vmatpush1.msra.mxu0 0.0
      %278 = vmatprep.subr.mxu0 0.0
      %279 = vmatpush1.msra.mxu0 0.0
      %280 = vmatprep.subr.mxu0 0.0
      %281 = vmatpush1.msra.mxu0 0.0
      %282 = vmatprep.subr.mxu0 0.0
      %283 = vmatpush1.msra.mxu0 0.0
      %284 = vmatprep.subr.mxu0 0.0
      %285 = vmatpush1.msra.mxu0 0.0
      %286 = vmatprep.subr.mxu0 0.0
      %287 = vmatpush1.msra.mxu0 0.0
      %288 = vmatprep.subr.mxu0 0.0
      %289 = vmatpush1.msra.mxu0 0.0
      %290 = vmatprep.subr.mxu0 0.0
      %291 = vmatpush1.msra.mxu0 0.0
      %292 = vmatprep.subr.mxu0 0.0
      %293 = vmatpush1.msra.mxu0 0.0
      %294 = vmatprep.subr.mxu0 0.0
      %295 = vmatpush1.msra.mxu0 0.0
      %296 = vmatprep.subr.mxu0 0.0
      %297 = vmatpush1.msra.mxu0 0.0
      %298 = vmatprep.subr.mxu0 0.0
      %299 = vmatpush1.msra.mxu0 0.0
      %300 = vmatprep.subr.mxu0 0.0
      %301 = vmatpush1.msra.mxu0 0.0
      %302 = vmatprep.mubr.f32.mxu0 0.0
      %303 = vmatmul.mubr.f32.gmra.mrb[0].mxu0 %v227
      %v304 = vpop.f32.mrb[0].mxu0
      %v305 = vadd.f32 0.0, %v304
      %v306 = vpop.f32.mrb[0].mxu0
      %v307 = vadd.f32 0.0, %v306
      %308 = vmatprep.mubr.f32.mxu0 0.0
      %309 = vmatmul.mubr.f32.gmra.mrb[0].mxu0 %v230
      %v310 = vpop.f32.mrb[0].mxu0
      %v311 = vadd.f32 0.0, %v310
      %v312 = vpop.f32.mrb[0].mxu0
      %v313 = vadd.f32 0.0, %v312
      %314 = vmatprep.mubr.f32.mxu0 0.0
      %315 = vmatmul.mubr.f32.gmra.mrb[0].mxu0 %v233
      %v316 = vpop.f32.mrb[0].mxu0
      %v317 = vadd.f32 0.0, %v316
      %v318 = vpop.f32.mrb[0].mxu0
      %v319 = vadd.f32 0.0, %v318
      %320 = vmatprep.mubr.f32.mxu0 0.0
      %321 = vmatmul.mubr.f32.gmra.mrb[0].mxu0 %v236
      %v322 = vpop.f32.mrb[0].mxu0
      %v323 = vadd.f32 0.0, %v322
      %v324 = vpop.f32.mrb[0].mxu0
      %v325 = vadd.f32 0.0, %v324
      %326 = vdwg.mxu0
      %327 = vst [vmem:[%s205] sm:$0xff] %v305
      %328 = vst [vmem:[%s205 + $0x8] sm:$0xff] %v307
      %329 = vst [vmem:[%s205 + $0x10] sm:$0xff] %v311
      %330 = vst [vmem:[%s205 + $0x18] sm:$0xff] %v313
      %331 = vst [vmem:[%s205 + $0x20] sm:$0xff] %v317
      %332 = vst [vmem:[%s205 + $0x28] sm:$0xff] %v319
      %333 = vst [vmem:[%s205 + $0x30] sm:$0xff] %v323
      %334 = vst [vmem:[%s205 + $0x38] sm:$0xff] %v325
      %v335 = vld [vmem:[%s2] sm:$0x3]
      %v337 = vlaneseq
      %v338 = vshrl.u32 %v337, 7
      %v339 = vsub.s32 0, %v338
      %v340 = vrot.slane %v335, %v339
      %v341 = vlaneseq
      %v342 = vshrl.u32 %v341, 7
      %v343 = vsub.s32 1, %v342
      %v344 = vrot.slane %v335, %v343
      %v347 = vmul.f32 %v305, %v340
      %v348 = vmul.f32 %v307, %v344
      %v349 = vmul.f32 %v311, %v340
      %v350 = vmul.f32 %v313, %v344
      %v351 = vmul.f32 %v317, %v340
      %v352 = vmul.f32 %v319, %v344
      %v353 = vmul.f32 %v323, %v340
      %v354 = vmul.f32 %v325, %v344
      %v355 = vadd.f32 %v347, %v348
      %356 = vadd.xlane.f32.xlu0 %v355
      %v357 = vpop.xlane.xlu0 %356
      %v358 = vadd.f32 %v349, %v350
      %359 = vadd.xlane.f32.xlu0 %v358
      %v360 = vpop.xlane.xlu0 %359
      %v361 = vadd.f32 %v351, %v352
      %362 = vadd.xlane.f32.xlu0 %v361
      %v363 = vpop.xlane.xlu0 %362
      %v364 = vadd.f32 %v353, %v354
      %365 = vadd.xlane.f32.xlu0 %v364
      %v366 = vpop.xlane.xlu0 %365
      %vm367 = vcmask 7168
      %368 = vst.msk [vmem:[%s210] sm:$0xff] %vm367, %v357
      %369 = vst.msk [vmem:[%s210 + $0x8] sm:$0xff] %vm367, %v360
      %370 = vst.msk [vmem:[%s210 + $0x10] sm:$0xff] %vm367, %v363
      %371 = vst.msk [vmem:[%s210 + $0x18] sm:$0xff] %vm367, %v366
      %v372 = vmul.f32 %v347, %v305
      %v373 = vmul.f32 %v348, %v307
      %v374 = vmul.f32 %v349, %v311
      %v375 = vmul.f32 %v350, %v313
      %v376 = vmul.f32 %v351, %v317
      %v377 = vmul.f32 %v352, %v319
      %v378 = vmul.f32 %v353, %v323
      %v379 = vmul.f32 %v354, %v325
      %v380 = vadd.f32 %v372, %v373
      %381 = vadd.xlane.f32.xlu0 %v380
      %v382 = vpop.xlane.xlu0 %381
      %v383 = vadd.f32 %v374, %v375
      %384 = vadd.xlane.f32.xlu0 %v383
      %v385 = vpop.xlane.xlu0 %384
      %v386 = vadd.f32 %v376, %v377
      %387 = vadd.xlane.f32.xlu0 %v386
      %v388 = vpop.xlane.xlu0 %387
      %v389 = vadd.f32 %v378, %v379
      %390 = vadd.xlane.f32.xlu0 %v389
      %v391 = vpop.xlane.xlu0 %390
      %vm392 = vcmask 15368
      %393 = vst.msk [vmem:[%s210] sm:$0xff] %vm392, %v382
      %394 = vst.msk [vmem:[%s210 + $0x8] sm:$0xff] %vm392, %v385
      %395 = vst.msk [vmem:[%s210 + $0x10] sm:$0xff] %vm392, %v388
      %396 = vst.msk [vmem:[%s210 + $0x18] sm:$0xff] %vm392, %v391
      %p397 = scmp.lt.s32.totalorder %s16, 1
      %s398 = scalar_select %p397, %s16, 1
      %s399 = smul.addr %s398, 8
      %s400 = smul.addr %s399, 8
      %s401 = scalar_lea.vmem %s3, %s400
      %p402 = scmp.lt.s32.totalorder %s16, 1
      %s403 = scalar_select %p402, %s16, 1
      %s404 = smul.addr %s403, 4
      %s405 = smul.addr %s404, 8
      %s406 = scalar_lea.vmem %s4, %s405
      // Predicated region
      $region33: #{up_conv_forward.2} parent=31 // pred_check
        %p407 = pneg %p102
      $region34: #{up_conv_forward.2} parent=31 // pred_check_branch
        %409 = sbr.rel (%p407) target = $region36
      $region35: #{up_conv_forward.2} parent=31 // pred_region
        _
      $region36: #{up_conv_forward.2} parent=31 // pred_fallthru
        _
      // Predicated region
      $region37: #{up_conv_forward.2} parent=31 // pred_check
        %p410 = pneg %p128
      $region38: #{up_conv_forward.2} parent=31 // pred_check_branch
        %412 = sbr.rel (%p410) target = $region40
      $region39: #{up_conv_forward.2} parent=31 // pred_region
        _
      $region40: #{up_conv_forward.2} parent=31 // pred_fallthru
        _
    $region32: #{up_conv_forward.2} parent=5 // pred_fallthru
      _
    %p413 = scmp.le.s32.totalorder 2, %s11
    // Predicated region
    $region41: #{up_conv_forward.2} parent=5 // pred_check
      %p414 = pneg %p413
    $region42: #{up_conv_forward.2} parent=5 // pred_check_branch
      %416 = sbr.rel (%p414) target = $region44
    $region43: #{up_conv_forward.2} parent=5 // pred_region
      %s417 = ssub.s32 %s11, 2
      // Predicated region
      $region45: #{up_conv_forward.2} parent=43 // pred_check
        %p418 = pneg %p108
      $region46: #{up_conv_forward.2} parent=43 // pred_check_branch
        %420 = sbr.rel (%p418) target = $region48
      $region47: #{up_conv_forward.2} parent=43 // pred_region
        %p421 = scmp.lt.s32.totalorder %s17, 1
        %s422 = scalar_select %p421, %s17, 1
        %s423 = smul.addr %s422, 8
        %s424 = smul.addr %s423, 8
        %s425 = scalar_lea.vmem %s3, %s424
      $region48: #{up_conv_forward.2} parent=43 // pred_fallthru
        _
      // Predicated region
      $region49: #{up_conv_forward.2} parent=43 // pred_check
        %p426 = pneg %p134
      $region50: #{up_conv_forward.2} parent=43 // pred_check_branch
        %428 = sbr.rel (%p426) target = $region52
      $region51: #{up_conv_forward.2} parent=43 // pred_region
        %p429 = scmp.lt.s32.totalorder %s17, 1
        %s430 = scalar_select %p429, %s17, 1
        %s431 = smul.addr %s430, 4
        %s432 = smul.addr %s431, 8
        %s433 = scalar_lea.vmem %s4, %s432
      $region52: #{up_conv_forward.2} parent=43 // pred_fallthru
        _
    $region44: #{up_conv_forward.2} parent=5 // pred_fallthru
      _
  $region6: #{up_conv_forward.2} parent=0 // loop_footer
    %s15 = sadd.s32 1, %s11
  $region7: #{up_conv_forward.2} parent=0 // loop_footer_branch
    %10 = sbr.rel target = $region3
  $region8: #{up_conv_forward.2} parent=0 // loop_exit
    _

// kernel: up_conv_forward.3
$region0: #{up_conv_forward.3}
  #allocation0 [shape = 'u32[]', space=smem, size = 0x4, offset = 0x4, fixed_abs, tag = 'smem constant byte address 0x4 - core index']
  #allocation1 [shape = 'u32[144,128]{1,0:T(1,128)}', space=vmem, size = 0x12000, scoped, tag = 'internal scratch']
  %s0 = inlined_call_operand.vmem [shape: f32[2,32,256], index: 0, kind: input, shape index: {}, may-alias: {0,3}]
  %s1 = inlined_call_operand.vmem [shape: f32[32,1], index: 1, kind: input, shape index: {}]
  %s2 = inlined_call_operand.vmem [shape: f32[32,1], index: 2, kind: input, shape index: {}]
  %s3 = inlined_call_operand.vmem [shape: f32[2,32,256], index: 3, kind: output, shape index: {}, may-alias: {0,3}]
  %s4 = sld [smem:[#allocation0]]
  $region45: #{up_conv_forward.3} parent=0
    _
  %s6 = ssub.s32 1, %s4
  %s7 = scalar_select 0, %s6, %s4
  loop: start=0, step=1, limit=4
  $region2: #{up_conv_forward.3} parent=0 // loop_pre_header
    _
  $region3: #{up_conv_forward.3} parent=0 // loop_header
    %s9 = sphi 0, %s13
    %p10 = scmp.ge.s32.totalorder %s9, 4
    %s19 = sphi 0, %s21
    %s22 = sphi 0, %s19
    %s23 = sphi 0, %s22
    %s39 = sphi 0, %s23
    %s43 = sphi 0, %s43
    %s45 = sphi 0, %s43
    %s46 = sphi 0, %s45
    %s60 = sphi 0, %s46
    %s64 = sphi 0, %s64
    %s66 = sphi 0, %s64
    %s67 = sphi 0, %s66
    %s81 = sphi 0, %s67
    %s87 = sphi 0, %s89
    %s90 = sphi 0, %s87
    %s91 = sphi 0, %s90
    %s107 = sphi 0, %s91
  $region4: #{up_conv_forward.3} parent=0 // loop_header_branch
    %12 = sbr.rel (%p10) target = $region8
  $region5: #{up_conv_forward.3} parent=0 // loop_body
    %s14 = ssub.s32 %s9, 1
    %s15 = ssub.s32 %s9, 2
    %s16 = sadd.s32 %s9, 1
    %s17 = ssub.s32 %s9, %s16
    %p18 = scmp.eq.s32.totalorder %s17, 0
    %s20 = sadd.s32 %s19, 1
    %s21 = scalar_select %p18, %s19, %s20
    %p24 = pneg %p18
    %p25 = scmp.eq.s32.totalorder %s9, 1
    %p26 = por %p24, %p25
    %p27 = scmp.ne.s32.totalorder %s19, %s22
    %p28 = scmp.eq.s32.totalorder %s9, 0
    %p29 = por %p27, %p28
    %p30 = scmp.ne.s32.totalorder %s19, %s22
    %p31 = scmp.eq.s32.totalorder %s14, 1
    %p32 = por %p30, %p31
    %p33 = scmp.ne.s32.totalorder %s22, %s23
    %p34 = scmp.eq.s32.totalorder %s14, 0
    %p35 = por %p33, %p34
    %p36 = scmp.ne.s32.totalorder %s22, %s23
    %p37 = scmp.eq.s32.totalorder %s15, 1
    %p38 = por %p36, %p37
    %p40 = scmp.ne.s32.totalorder %s23, %s39
    %p41 = scmp.eq.s32.totalorder %s15, 0
    %p42 = por %p40, %p41
    %s44 = sadd.s32 %s43, 1
    %p47 = scmp.eq.s32.totalorder %s9, 1
    %p48 = scmp.ne.s32.totalorder %s43, %s45
    %p49 = scmp.eq.s32.totalorder %s9, 0
    %p50 = por %p48, %p49
    %p51 = scmp.ne.s32.totalorder %s43, %s45
    %p52 = scmp.eq.s32.totalorder %s14, 1
    %p53 = por %p51, %p52
    %p54 = scmp.ne.s32.totalorder %s45, %s46
    %p55 = scmp.eq.s32.totalorder %s14, 0
    %p56 = por %p54, %p55
    %p57 = scmp.ne.s32.totalorder %s45, %s46
    %p58 = scmp.eq.s32.totalorder %s15, 1
    %p59 = por %p57, %p58
    %p61 = scmp.ne.s32.totalorder %s46, %s60
    %p62 = scmp.eq.s32.totalorder %s15, 0
    %p63 = por %p61, %p62
    %s65 = sadd.s32 %s64, 1
    %p68 = scmp.eq.s32.totalorder %s9, 1
    %p69 = scmp.ne.s32.totalorder %s64, %s66
    %p70 = scmp.eq.s32.totalorder %s9, 0
    %p71 = por %p69, %p70
    %p72 = scmp.ne.s32.totalorder %s64, %s66
    %p73 = scmp.eq.s32.totalorder %s14, 1
    %p74 = por %p72, %p73
    %p75 = scmp.ne.s32.totalorder %s66, %s67
    %p76 = scmp.eq.s32.totalorder %s14, 0
    %p77 = por %p75, %p76
    %p78 = scmp.ne.s32.totalorder %s66, %s67
    %p79 = scmp.eq.s32.totalorder %s15, 1
    %p80 = por %p78, %p79
    %p82 = scmp.ne.s32.totalorder %s67, %s81
    %p83 = scmp.eq.s32.totalorder %s15, 0
    %p84 = por %p82, %p83
    %s85 = ssub.s32 %s9, %s16
    %p86 = scmp.eq.s32.totalorder %s85, 0
    %s88 = sadd.s32 %s87, 1
    %s89 = scalar_select %p86, %s87, %s88
    %p92 = pneg %p86
    %p93 = scmp.eq.s32.totalorder %s9, 1
    %p94 = por %p92, %p93
    %p95 = scmp.ne.s32.totalorder %s87, %s90
    %p96 = scmp.eq.s32.totalorder %s9, 0
    %p97 = por %p95, %p96
    %p98 = scmp.ne.s32.totalorder %s87, %s90
    %p99 = scmp.eq.s32.totalorder %s14, 1
    %p100 = por %p98, %p99
    %p101 = scmp.ne.s32.totalorder %s90, %s91
    %p102 = scmp.eq.s32.totalorder %s14, 0
    %p103 = por %p101, %p102
    %p104 = scmp.ne.s32.totalorder %s90, %s91
    %p105 = scmp.eq.s32.totalorder %s15, 1
    %p106 = por %p104, %p105
    %p108 = scmp.ne.s32.totalorder %s91, %s107
    %p109 = scmp.eq.s32.totalorder %s15, 0
    %p110 = por %p108, %p109
    %p111 = scmp.le.s32.totalorder 1, %s9
    %p112 = scmp.lt.s32.totalorder %s9, 3
    %p113 = pnand %p111, %p112
    %p114 = pneg %p113
    // Predicated region
    $region9: #{up_conv_forward.3} parent=5 // pred_check
      _
    $region10: #{up_conv_forward.3} parent=5 // pred_check_branch
      %116 = sbr.rel (%p113) target = $region12
    $region11: #{up_conv_forward.3} parent=5 // pred_region
      %s117 = ssub.s32 %s9, 1
      // Predicated region
      $region13: #{up_conv_forward.3} parent=11 // pred_check
        %p118 = pneg %p56
      $region14: #{up_conv_forward.3} parent=11 // pred_check_branch
        %120 = sbr.rel (%p118) target = $region16
      $region15: #{up_conv_forward.3} parent=11 // pred_region
        _
      $region16: #{up_conv_forward.3} parent=11 // pred_fallthru
        _
      // Predicated region
      $region17: #{up_conv_forward.3} parent=11 // pred_check
        %p121 = pneg %p77
      $region18: #{up_conv_forward.3} parent=11 // pred_check_branch
        %123 = sbr.rel (%p121) target = $region20
      $region19: #{up_conv_forward.3} parent=11 // pred_region
        _
      $region20: #{up_conv_forward.3} parent=11 // pred_fallthru
        _
    $region12: #{up_conv_forward.3} parent=5 // pred_fallthru
      _
    %p124 = scmp.lt.s32.totalorder %s9, 2
    // Predicated region
    $region21: #{up_conv_forward.3} parent=5 // pred_check
      %p125 = pneg %p124
    $region22: #{up_conv_forward.3} parent=5 // pred_check_branch
      %127 = sbr.rel (%p125) target = $region24
    $region23: #{up_conv_forward.3} parent=5 // pred_region
      // Predicated region
      $region25: #{up_conv_forward.3} parent=23 // pred_check
        %p128 = pneg %p29
      $region26: #{up_conv_forward.3} parent=23 // pred_check_branch
        %130 = sbr.rel (%p128) target = $region28
      $region27: #{up_conv_forward.3} parent=23 // pred_region
        %p131 = scmp.lt.s32.totalorder %s9, 1
        %s132 = scalar_select %p131, %s9, 1
        %s133 = smul.addr %s132, 8
        %s134 = smul.addr %s133, 8
        %s135 = scalar_lea.vmem %s0, %s134
      $region28: #{up_conv_forward.3} parent=23 // pred_fallthru
        _
    $region24: #{up_conv_forward.3} parent=5 // pred_fallthru
      _
    %p136 = scmp.le.s32.totalorder 1, %s9
    %p137 = scmp.lt.s32.totalorder %s9, 3
    %p138 = pnand %p136, %p137
    %p139 = pneg %p138
    // Predicated region
    $region29: #{up_conv_forward.3} parent=5 // pred_check
      _
    $region30: #{up_conv_forward.3} parent=5 // pred_check_branch
      %141 = sbr.rel (%p138) target = $region32
    $region31: #{up_conv_forward.3} parent=5 // pred_region
      %s142 = ssub.s32 %s9, 1
      %p143 = scmp.lt.s32.totalorder %s14, 1
      %s144 = scalar_select %p143, %s14, 1
      %s145 = smul.addr %s144, 8
      %s146 = smul.addr %s145, 8
      %s147 = scalar_lea.vmem %s0, %s146
      %p148 = pneg %p35
      %p149 = pneg %p32
      %p150 = pneg %p56
      %p151 = pneg %p53
      %p152 = pneg %p77
      %p153 = pneg %p74
      %p154 = pneg %p103
      %p155 = pneg %p100
      %p156 = scmp.lt.s32.totalorder %s14, 1
      %s157 = scalar_select %p156, %s14, 1
      %s158 = smul.addr %s157, 8
      %s159 = smul.addr %s158, 8
      %s160 = scalar_lea.vmem %s3, %s159
      %p161 = scmp.lt.s32.totalorder %s14, 1
      %s162 = scalar_select %p161, %s14, 1
      %s163 = smul.addr %s162, 8
      %s164 = smul.addr %s163, 8
      %s165 = scalar_lea.vmem %s0, %s164
      %p166 = scmp.lt.s32.totalorder %s14, 1
      %s167 = scalar_select %p166, %s14, 1
      %s168 = smul.addr %s167, 8
      %s169 = smul.addr %s168, 8
      %s170 = scalar_lea.vmem %s3, %s169
      %v171 = vld [vmem:[%s165] sm:$0xff]
      %v172 = vld [vmem:[%s165 + $0x8] sm:$0xff]
      %v173 = vld [vmem:[%s165 + $0x10] sm:$0xff]
      %v174 = vld [vmem:[%s165 + $0x18] sm:$0xff]
      %v175 = vld [vmem:[%s165 + $0x20] sm:$0xff]
      %v176 = vld [vmem:[%s165 + $0x28] sm:$0xff]
      %v177 = vld [vmem:[%s165 + $0x30] sm:$0xff]
      %v178 = vld [vmem:[%s165 + $0x38] sm:$0xff]
      %v179 = vld [vmem:[%s1] sm:$0xff]
      %v180 = vld [vmem:[%s1 + $0x8] sm:$0xff]
      %v181 = vld [vmem:[%s1 + $0x10] sm:$0xff]
      %v182 = vld [vmem:[%s1 + $0x18] sm:$0xff]
      %184 = vset.pattern.permute.xlu0 0
      %185 = vperm.xlu0 %184, %v179
      %v186 = vpop.permute.xlu0 %185
      %189 = vset.pattern.permute.xlu0 0
      %190 = vperm.xlu0 %189, %v180
      %v191 = vpop.permute.xlu0 %190
      %194 = vset.pattern.permute.xlu0 0
      %195 = vperm.xlu0 %194, %v181
      %v196 = vpop.permute.xlu0 %195
      %199 = vset.pattern.permute.xlu0 0
      %200 = vperm.xlu0 %199, %v182
      %v201 = vpop.permute.xlu0 %200
      %v203 = vmul.f32 %v171, %v186
      %v204 = vmul.f32 %v172, %v186
      %v205 = vmul.f32 %v173, %v191
      %v206 = vmul.f32 %v174, %v191
      %v207 = vmul.f32 %v175, %v196
      %v208 = vmul.f32 %v176, %v196
      %v209 = vmul.f32 %v177, %v201
      %v210 = vmul.f32 %v178, %v201
      %v211 = vld [vmem:[%s2] sm:$0xff]
      %v212 = vld [vmem:[%s2 + $0x8] sm:$0xff]
      %v213 = vld [vmem:[%s2 + $0x10] sm:$0xff]
      %v214 = vld [vmem:[%s2 + $0x18] sm:$0xff]
      %216 = vset.pattern.permute.xlu0 0
      %217 = vperm.xlu0 %216, %v211
      %v218 = vpop.permute.xlu0 %217
      %221 = vset.pattern.permute.xlu0 0
      %222 = vperm.xlu0 %221, %v212
      %v223 = vpop.permute.xlu0 %222
      %226 = vset.pattern.permute.xlu0 0
      %227 = vperm.xlu0 %226, %v213
      %v228 = vpop.permute.xlu0 %227
      %231 = vset.pattern.permute.xlu0 0
      %232 = vperm.xlu0 %231, %v214
      %v233 = vpop.permute.xlu0 %232
      %v235 = vadd.f32 %v203, %v218
      %v236 = vadd.f32 %v204, %v218
      %v237 = vadd.f32 %v205, %v223
      %v238 = vadd.f32 %v206, %v223
      %v239 = vadd.f32 %v207, %v228
      %v240 = vadd.f32 %v208, %v228
      %v241 = vadd.f32 %v209, %v233
      %v242 = vadd.f32 %v210, %v233
      %v243 = vmax.f32 %v235, 0.0
      %v244 = vmax.f32 %v236, 0.0
      %v245 = vmax.f32 %v237, 0.0
      %v246 = vmax.f32 %v238, 0.0
      %v247 = vmax.f32 %v239, 0.0
      %v248 = vmax.f32 %v240, 0.0
      %v249 = vmax.f32 %v241, 0.0
      %v250 = vmax.f32 %v242, 0.0
      %251 = vst [vmem:[%s170] sm:$0xff] %v243
      %252 = vst [vmem:[%s170 + $0x8] sm:$0xff] %v244
      %253 = vst [vmem:[%s170 + $0x10] sm:$0xff] %v245
      %254 = vst [vmem:[%s170 + $0x18] sm:$0xff] %v246
      %255 = vst [vmem:[%s170 + $0x20] sm:$0xff] %v247
      %256 = vst [vmem:[%s170 + $0x28] sm:$0xff] %v248
      %257 = vst [vmem:[%s170 + $0x30] sm:$0xff] %v249
      %258 = vst [vmem:[%s170 + $0x38] sm:$0xff] %v250
      %p259 = scmp.lt.s32.totalorder %s14, 1
      %s260 = scalar_select %p259, %s14, 1
      %s261 = smul.addr %s260, 8
      %s262 = smul.addr %s261, 8
      %s263 = scalar_lea.vmem %s3, %s262
      // Predicated region
      $region33: #{up_conv_forward.3} parent=31 // pred_check
        %p264 = pneg %p100
      $region34: #{up_conv_forward.3} parent=31 // pred_check_branch
        %266 = sbr.rel (%p264) target = $region36
      $region35: #{up_conv_forward.3} parent=31 // pred_region
        _
      $region36: #{up_conv_forward.3} parent=31 // pred_fallthru
        _
    $region32: #{up_conv_forward.3} parent=5 // pred_fallthru
      _
    %p267 = scmp.le.s32.totalorder 2, %s9
    // Predicated region
    $region37: #{up_conv_forward.3} parent=5 // pred_check
      %p268 = pneg %p267
    $region38: #{up_conv_forward.3} parent=5 // pred_check_branch
      %270 = sbr.rel (%p268) target = $region40
    $region39: #{up_conv_forward.3} parent=5 // pred_region
      %s271 = ssub.s32 %s9, 2
      // Predicated region
      $region41: #{up_conv_forward.3} parent=39 // pred_check
        %p272 = pneg %p106
      $region42: #{up_conv_forward.3} parent=39 // pred_check_branch
        %274 = sbr.rel (%p272) target = $region44
      $region43: #{up_conv_forward.3} parent=39 // pred_region
        %p275 = scmp.lt.s32.totalorder %s15, 1
        %s276 = scalar_select %p275, %s15, 1
        %s277 = smul.addr %s276, 8
        %s278 = smul.addr %s277, 8
        %s279 = scalar_lea.vmem %s3, %s278
      $region44: #{up_conv_forward.3} parent=39 // pred_fallthru
        _
    $region40: #{up_conv_forward.3} parent=5 // pred_fallthru
      _
  $region6: #{up_conv_forward.3} parent=0 // loop_footer
    %s13 = sadd.s32 1, %s9
  $region7: #{up_conv_forward.3} parent=0 // loop_footer_branch
    %8 = sbr.rel target = $region3
  $region8: #{up_conv_forward.3} parent=0 // loop_exit
    _

</llo_original>
